<compile_context>
chip_gen: v6e
topology: v6e:2x2x1
jax: 0.10.0
libtpu: 0.0.40
codegen_flags: <defaults>
</compile_context>

<pallas_src>
import functools

import jax
import jax.numpy as jnp
from jax import lax
from jax.experimental import pallas as pl
from jax.experimental.pallas import tpu as pltpu

KSIZE = 3                     # kernel_size=3, stride=1, padding=1 (module defaults)
NTAPS = KSIZE * KSIZE


def _dwsep_kernel(x_ref, w_ref, b_ref, m_ref, o_ref, stage_ref, *, width):
    """One (batch n, Cout-tile j) grid step.

    x_ref    : (1, C, H*W)      row-flattened input plane (input dtype)
    w_ref    : (TCout, 9*C)     fused per-tap pointwise weights (compute dtype)
    b_ref    : (TCout, 1)       fused bias, f32
    m_ref    : (9, 1, H*W)      per-tap border masks (input dtype)
    o_ref    : (1, TCout, H*W)  lane-dense output tile
    stage_ref: (9*C, H*W)       persistent VMEM staging buffer (compute dtype)
    """
    C = x_ref.shape[1]
    flat = x_ref.shape[2]

    # Build the stacked-K staging buffer once per image (j == 0); it is reused
    # across all Cout tiles of that image.  Each tap = one lane roll of the
    # flattened plane + a precomputed border mask (virtual zero padding in both
    # H and W).  One tap is built right before it is stored -> only one shifted
    # temporary is live at a time.
    @pl.when(pl.program_id(1) == 0)
    def _build_taps():
        x = x_ref[0]                                       # (C, H*W)
        for tap in range(NTAPS):
            ki, kj = tap // KSIZE, tap % KSIZE
            d = (ki - 1) * width + (kj - 1)                # flattened tap offset
            shifted = x if d == 0 else pltpu.roll(x, (-d) % flat, axis=1)
            stage_ref[pl.ds(tap * C, C), :] = (
                shifted * m_ref[tap]).astype(stage_ref.dtype)

    # Single MXU contraction over K = 9*C (depthwise taps folded into the
    # pointwise projection), f32 accumulation, fused bias.
    acc = jnp.dot(w_ref[...], stage_ref[...], preferred_element_type=jnp.float32)
    acc = acc + b_ref[...].astype(jnp.float32)
    o_ref[0] = acc.astype(o_ref.dtype)


def _vmem_capacity_bytes():
    """Physical VMEM of the local TPU generation (v7x: 64 MiB, v5e/v6e: 128 MiB)."""
    try:
        cap = getattr(pltpu.get_tpu_info(), "vmem_capacity_bytes", None)
        if cap:
            return int(cap)
    except Exception:
        pass
    return 64 << 20                      # conservative default (v7x per-core VMEM)


def _estimate_vmem(C, tcout, flat, in_item, cd_item, out_item):
    """Per-grid-step VMEM: pipeline blocks (double-buffered) + scratch + temps."""
    return (2 * C * flat * in_item              # input plane
            + 2 * NTAPS * flat * in_item        # border masks
            + 2 * tcout * NTAPS * C * cd_item   # fused weights
            + 2 * tcout * 4                     # fused bias
            + NTAPS * C * flat * cd_item        # staging scratch (single)
            + 2 * tcout * flat * out_item       # output tile
            + tcout * flat * 4                  # f32 accumulator
            + 2 * C * flat * in_item)           # live roll/mask temporaries


def _pick_cout_tile(C, Cout, flat, in_item, cd_item, out_item, budget):
    """Largest Cout tile (multiple of 8, or all of Cout) fitting the VMEM budget."""
    cands = [t for t in range(1, Cout + 1)
             if Cout % t == 0 and (t % 8 == 0 or t == Cout)]
    fitting = [t for t in cands
               if _estimate_vmem(C, t, flat, in_item, cd_item, out_item) <= budget]
    return max(fitting) if fitting else min(cands)


def depthwise_separable_conv(x_nchw, dw_w, dw_b, pw_w, pw_b, *,
                             cout_tile=None, compute_dtype=jnp.bfloat16):
    """Forward pass matching the PyTorch DepthwiseSeparableConv module.

    x_nchw : (N, C, H, W)
    dw_w   : (C, 1, 3, 3)     depthwise Conv2d weight (groups=C)
    dw_b   : (C,)
    pw_w   : (Cout, C, 1, 1)  pointwise Conv2d weight
    pw_b   : (Cout,)
    returns: (N, Cout, H, W)

    NOTE: the matmul formulation targets production channel counts; at tiny
    C/Cout (like the demo) the MXU is under-filled and the kernel is overhead
    dominated (documented per review).  bf16 compute (default) changes rounding
    vs. two f32 convs; pass compute_dtype=jnp.float32 for exact math.
    """
    N, C, H, W = x_nchw.shape
    Cout = pw_w.shape[0]
    assert dw_w.shape == (C, 1, KSIZE, KSIZE), "only 3x3 / stride 1 / pad 1 supported"
    assert pw_w.shape == (Cout, C, 1, 1)
    flat = H * W

    in_item = jnp.dtype(x_nchw.dtype).itemsize
    cd_item = jnp.dtype(compute_dtype).itemsize

    # Generation-aware VMEM budget + scoped-limit raise.
    cap = _vmem_capacity_bytes()
    vmem_limit = int(min(cap * 0.85, 100 << 20))

    tcout = cout_tile
    if tcout is None or Cout % tcout != 0 or (tcout % 8 != 0 and tcout != Cout):
        tcout = _pick_cout_tile(C, Cout, flat, in_item, cd_item, in_item,
                                budget=int(vmem_limit * 0.8))
    n_ctiles = Cout // tcout

    # ---- fused parameters (tiny; no large HBM copies) -----------------------
    dw2 = dw_w[:, 0, :, :]                                    # (C, 3, 3)
    pw2 = pw_w[:, :, 0, 0]                                    # (Cout, C)
    dwt = jnp.transpose(dw2, (1, 2, 0)).reshape(NTAPS, C)     # (9, C), tap-major
    # w_fused[o, tap*C + c] = pw2[o, c] * dw2[c, ki, kj]   with tap = ki*3 + kj
    w_fused = (pw2[:, None, :] * dwt[None, :, :]).reshape(Cout, NTAPS * C)
    w_fused = w_fused.astype(compute_dtype)
    # Depthwise bias folded into the pointwise bias (exact: pointwise is linear).
    b_eff = (pw_b + pw2 @ dw_b).reshape(Cout, 1).astype(jnp.float32)

    # Per-tap validity masks: virtual zero padding for both H and W borders,
    # hoisted out of the kernel hot path.  Shape (9, 1, H*W).
    hh = jnp.arange(H)[:, None]
    ww = jnp.arange(W)[None, :]
    tap_masks = []
    for ki in range(KSIZE):
        for kj in range(KSIZE):
            dh, dwo = ki - 1, kj - 1
            valid = ((hh + dh >= 0) & (hh + dh < H) &
                     (ww + dwo >= 0) & (ww + dwo < W))
            tap_masks.append(valid.reshape(1, flat))
    masks = jnp.stack(tap_masks, axis=0).astype(x_nchw.dtype)  # (9, 1, H*W)

    out_flat = pl.pallas_call(
        functools.partial(_dwsep_kernel, width=W),
        out_shape=jax.ShapeDtypeStruct((N, Cout, flat), x_nchw.dtype),
        grid=(N, n_ctiles),
        in_specs=[
            pl.BlockSpec((1, C, flat), lambda n, j: (n, 0, 0)),       # x plane
            pl.BlockSpec((tcout, NTAPS * C), lambda n, j: (j, 0)),    # fused weights
            pl.BlockSpec((tcout, 1), lambda n, j: (j, 0)),            # fused bias
            pl.BlockSpec((NTAPS, 1, flat), lambda n, j: (0, 0, 0)),   # border masks
        ],
        out_specs=pl.BlockSpec((1, tcout, flat), lambda n, j: (n, j, 0)),
        scratch_shapes=[pltpu.VMEM((NTAPS * C, flat), compute_dtype)],
        compiler_params=pltpu.CompilerParams(
            dimension_semantics=("parallel", "arbitrary"),
            vmem_limit_bytes=vmem_limit),
    )(x_nchw.reshape(N, C, flat), w_fused, b_eff, masks)

    # Lane-dense (N, Cout, H*W) -> NCHW is a free reshape (no transpose glue).
    return out_flat.reshape(N, Cout, H, W)


def _reference(x_nchw, dw_w, dw_b, pw_w, pw_b):
    """Pure-JAX reference using lax.conv (matches nn.Conv2d semantics)."""
    C = x_nchw.shape[1]
    dn = lax.conv_dimension_numbers(x_nchw.shape, dw_w.shape,
                                    ("NCHW", "OIHW", "NCHW"))
    y = lax.conv_general_dilated(x_nchw, dw_w, window_strides=(1, 1),
                                 padding=((1, 1), (1, 1)),
                                 dimension_numbers=dn,
                                 feature_group_count=C)
    y = y + dw_b.reshape(1, -1, 1, 1)
    dn2 = lax.conv_dimension_numbers(y.shape, pw_w.shape,
                                     ("NCHW", "OIHW", "NCHW"))
    z = lax.conv_general_dilated(y, pw_w, window_strides=(1, 1),
                                 padding=((0, 0), (0, 0)),
                                 dimension_numbers=dn2)
    return z + pw_b.reshape(1, -1, 1, 1)


if __name__ == "__main__":
    # Small shapes consistent with the module's forward.
    N, Cin, Cout, H, W = 2, 4, 16, 16, 16

    key = jax.random.PRNGKey(0)
    k1, k2, k3, k4, k5 = jax.random.split(key, 5)

    x = jax.random.normal(k1, (N, Cin, H, W), dtype=jnp.float32)
    dw_w = jax.random.normal(k2, (Cin, 1, KSIZE, KSIZE), dtype=jnp.float32) * 0.1
    dw_b = jax.random.normal(k3, (Cin,), dtype=jnp.float32) * 0.1
    pw_w = jax.random.normal(k4, (Cout, Cin, 1, 1), dtype=jnp.float32) * 0.1
    pw_b = jax.random.normal(k5, (Cout,), dtype=jnp.float32) * 0.1

    ref = jax.block_until_ready(_reference(x, dw_w, dw_b, pw_w, pw_b))

    # Exact-math path (f32 compute) — tight tolerance.
    out_f32 = jax.block_until_ready(
        depthwise_separable_conv(x, dw_w, dw_b, pw_w, pw_b,
                                 compute_dtype=jnp.float32))
    # Default bf16 MXU path, auto Cout tile (single tile at these shapes).
    out_auto = jax.block_until_ready(
        depthwise_separable_conv(x, dw_w, dw_b, pw_w, pw_b))
    # Forced Cout tiling (grid (N, 2)) — exercises the per-image staging reuse.
    out_tiled = jax.block_until_ready(
        depthwise_separable_conv(x, dw_w, dw_b, pw_w, pw_b, cout_tile=8))

    assert out_f32.shape == (N, Cout, H, W)
    assert out_auto.shape == (N, Cout, H, W)
    assert out_tiled.shape == (N, Cout, H, W)
    assert jnp.allclose(out_f32, ref, atol=1e-4, rtol=1e-4), "f32 mismatch"
    assert jnp.allclose(out_auto, ref, atol=2e-2, rtol=2e-2), "bf16 auto mismatch"
    assert jnp.allclose(out_tiled, ref, atol=2e-2, rtol=2e-2), "bf16 tiled mismatch"

    print("KERNEL_OK")
</pallas_src>

<mosaic_0001>
module attributes {stable_mosaic.version = 11 : i64} {
  func.func @_dwsep_kernel(%arg0: i32, %arg1: i32, %arg2: memref<1x4x256xf32, #tpu.memory_space<vmem>>, %arg3: memref<16x36xf32, #tpu.memory_space<vmem>>, %arg4: memref<16x1xf32, #tpu.memory_space<vmem>>, %arg5: memref<9x1x256xf32, #tpu.memory_space<vmem>>, %arg6: memref<1x16x256xf32, #tpu.memory_space<vmem>>, %arg7: memref<36x256xf32, #tpu.memory_space<vmem>>) attributes {dimension_semantics = [#tpu.dimension_semantics<parallel>, #tpu.dimension_semantics<arbitrary>], iteration_bounds = array<i64: 2, 1>, scalar_prefetch = 0 : i64, scratch_operands = 1 : i64, tpu.core_type = #tpu.core_type<tc>, window_params = [{transform_indices = @transform_0, window_bounds = array<i64: 1, 4, 256>}, {transform_indices = @transform_1, window_bounds = array<i64: 16, 36>}, {transform_indices = @transform_2, window_bounds = array<i64: 16, 1>}, {pipeline_mode = #tpu.pipeline_mode<synchronous>, transform_indices = @transform_3, window_bounds = array<i64: 9, 1, 256>}, {transform_indices = @transform_4, window_bounds = array<i64: 1, 16, 256>}]} {
    %c0_i32 = arith.constant 0 : i32
    %0 = arith.cmpi eq, %arg1, %c0_i32 : i32
    %1 = arith.extui %0 : i1 to i32
    %c0_i32_0 = arith.constant 0 : i32
    %2 = arith.cmpi ne, %1, %c0_i32_0 : i32
    scf.if %2 {
      %c0_9 = arith.constant 0 : index
      %c0_10 = arith.constant 0 : index
      %c0_11 = arith.constant 0 : index
      %12 = vector.load %arg2[%c0_9, %c0_10, %c0_11] : memref<1x4x256xf32, #tpu.memory_space<vmem>>, vector<1x4x256xf32>
      %13 = vector.shape_cast %12 : vector<1x4x256xf32> to vector<4x256xf32>
      %c17_i32 = arith.constant 17 : i32
      %14 = tpu.dynamic_rotate %13 by %c17_i32 dim 1 : vector<4x256xf32>, i32 -> vector<4x256xf32>
      %c0_12 = arith.constant 0 : index
      %c0_13 = arith.constant 0 : index
      %c0_14 = arith.constant 0 : index
      %15 = vector.load %arg5[%c0_12, %c0_13, %c0_14] : memref<9x1x256xf32, #tpu.memory_space<vmem>>, vector<1x1x256xf32>
      %16 = vector.shape_cast %15 : vector<1x1x256xf32> to vector<1x256xf32>
      %17 = vector.broadcast %16 : vector<1x256xf32> to vector<4x256xf32>
      %18 = arith.mulf %14, %17 : vector<4x256xf32>
      %c0_15 = arith.constant 0 : index
      %c0_16 = arith.constant 0 : index
      %19 = vector.load %arg7[%c0_15, %c0_16] : memref<36x256xf32, #tpu.memory_space<vmem>>, vector<4x256xf32>
      tpu.vector_store %arg7[%c0_15, %c0_16], %18 {strides = array<i32>} : memref<36x256xf32, #tpu.memory_space<vmem>>, vector<4x256xf32>,
      %c16_i32 = arith.constant 16 : i32
      %20 = tpu.dynamic_rotate %13 by %c16_i32 dim 1 : vector<4x256xf32>, i32 -> vector<4x256xf32>
      %c1 = arith.constant 1 : index
      %c0_17 = arith.constant 0 : index
      %c0_18 = arith.constant 0 : index
      %21 = vector.load %arg5[%c1, %c0_17, %c0_18] : memref<9x1x256xf32, #tpu.memory_space<vmem>>, vector<1x1x256xf32>
      %22 = vector.shape_cast %21 : vector<1x1x256xf32> to vector<1x256xf32>
      %23 = vector.broadcast %22 : vector<1x256xf32> to vector<4x256xf32>
      %24 = arith.mulf %20, %23 : vector<4x256xf32>
      %c4 = arith.constant 4 : index
      %c0_19 = arith.constant 0 : index
      %25 = vector.load %arg7[%c4, %c0_19] : memref<36x256xf32, #tpu.memory_space<vmem>>, vector<4x256xf32>
      tpu.vector_store %arg7[%c4, %c0_19], %24 {strides = array<i32>} : memref<36x256xf32, #tpu.memory_space<vmem>>, vector<4x256xf32>,
      %c15_i32 = arith.constant 15 : i32
      %26 = tpu.dynamic_rotate %13 by %c15_i32 dim 1 : vector<4x256xf32>, i32 -> vector<4x256xf32>
      %c2 = arith.constant 2 : index
      %c0_20 = arith.constant 0 : index
      %c0_21 = arith.constant 0 : index
      %27 = vector.load %arg5[%c2, %c0_20, %c0_21] : memref<9x1x256xf32, #tpu.memory_space<vmem>>, vector<1x1x256xf32>
      %28 = vector.shape_cast %27 : vector<1x1x256xf32> to vector<1x256xf32>
      %29 = vector.broadcast %28 : vector<1x256xf32> to vector<4x256xf32>
      %30 = arith.mulf %26, %29 : vector<4x256xf32>
      %c8 = arith.constant 8 : index
      %c0_22 = arith.constant 0 : index
      %31 = vector.load %arg7[%c8, %c0_22] : memref<36x256xf32, #tpu.memory_space<vmem>>, vector<4x256xf32>
      tpu.vector_store %arg7[%c8, %c0_22], %30 {strides = array<i32>} : memref<36x256xf32, #tpu.memory_space<vmem>>, vector<4x256xf32>,
      %c1_i32 = arith.constant 1 : i32
      %32 = tpu.dynamic_rotate %13 by %c1_i32 dim 1 : vector<4x256xf32>, i32 -> vector<4x256xf32>
      %c3 = arith.constant 3 : index
      %c0_23 = arith.constant 0 : index
      %c0_24 = arith.constant 0 : index
      %33 = vector.load %arg5[%c3, %c0_23, %c0_24] : memref<9x1x256xf32, #tpu.memory_space<vmem>>, vector<1x1x256xf32>
      %34 = vector.shape_cast %33 : vector<1x1x256xf32> to vector<1x256xf32>
      %35 = vector.broadcast %34 : vector<1x256xf32> to vector<4x256xf32>
      %36 = arith.mulf %32, %35 : vector<4x256xf32>
      %c12 = arith.constant 12 : index
      %c0_25 = arith.constant 0 : index
      %37 = vector.load %arg7[%c12, %c0_25] : memref<36x256xf32, #tpu.memory_space<vmem>>, vector<4x256xf32>
      tpu.vector_store %arg7[%c12, %c0_25], %36 {strides = array<i32>} : memref<36x256xf32, #tpu.memory_space<vmem>>, vector<4x256xf32>,
      %c4_26 = arith.constant 4 : index
      %c0_27 = arith.constant 0 : index
      %c0_28 = arith.constant 0 : index
      %38 = vector.load %arg5[%c4_26, %c0_27, %c0_28] : memref<9x1x256xf32, #tpu.memory_space<vmem>>, vector<1x1x256xf32>
      %39 = vector.shape_cast %38 : vector<1x1x256xf32> to vector<1x256xf32>
      %40 = vector.broadcast %39 : vector<1x256xf32> to vector<4x256xf32>
      %41 = arith.mulf %13, %40 : vector<4x256xf32>
      %c16 = arith.constant 16 : index
      %c0_29 = arith.constant 0 : index
      %42 = vector.load %arg7[%c16, %c0_29] : memref<36x256xf32, #tpu.memory_space<vmem>>, vector<4x256xf32>
      tpu.vector_store %arg7[%c16, %c0_29], %41 {strides = array<i32>} : memref<36x256xf32, #tpu.memory_space<vmem>>, vector<4x256xf32>,
      %c255_i32 = arith.constant 255 : i32
      %43 = tpu.dynamic_rotate %13 by %c255_i32 dim 1 : vector<4x256xf32>, i32 -> vector<4x256xf32>
      %c5 = arith.constant 5 : index
      %c0_30 = arith.constant 0 : index
      %c0_31 = arith.constant 0 : index
      %44 = vector.load %arg5[%c5, %c0_30, %c0_31] : memref<9x1x256xf32, #tpu.memory_space<vmem>>, vector<1x1x256xf32>
      %45 = vector.shape_cast %44 : vector<1x1x256xf32> to vector<1x256xf32>
      %46 = vector.broadcast %45 : vector<1x256xf32> to vector<4x256xf32>
      %47 = arith.mulf %43, %46 : vector<4x256xf32>
      %c20 = arith.constant 20 : index
      %c0_32 = arith.constant 0 : index
      %48 = vector.load %arg7[%c20, %c0_32] : memref<36x256xf32, #tpu.memory_space<vmem>>, vector<4x256xf32>
      tpu.vector_store %arg7[%c20, %c0_32], %47 {strides = array<i32>} : memref<36x256xf32, #tpu.memory_space<vmem>>, vector<4x256xf32>,
      %c241_i32 = arith.constant 241 : i32
      %49 = tpu.dynamic_rotate %13 by %c241_i32 dim 1 : vector<4x256xf32>, i32 -> vector<4x256xf32>
      %c6 = arith.constant 6 : index
      %c0_33 = arith.constant 0 : index
      %c0_34 = arith.constant 0 : index
      %50 = vector.load %arg5[%c6, %c0_33, %c0_34] : memref<9x1x256xf32, #tpu.memory_space<vmem>>, vector<1x1x256xf32>
      %51 = vector.shape_cast %50 : vector<1x1x256xf32> to vector<1x256xf32>
      %52 = vector.broadcast %51 : vector<1x256xf32> to vector<4x256xf32>
      %53 = arith.mulf %49, %52 : vector<4x256xf32>
      %c24 = arith.constant 24 : index
      %c0_35 = arith.constant 0 : index
      %54 = vector.load %arg7[%c24, %c0_35] : memref<36x256xf32, #tpu.memory_space<vmem>>, vector<4x256xf32>
      tpu.vector_store %arg7[%c24, %c0_35], %53 {strides = array<i32>} : memref<36x256xf32, #tpu.memory_space<vmem>>, vector<4x256xf32>,
      %c240_i32 = arith.constant 240 : i32
      %55 = tpu.dynamic_rotate %13 by %c240_i32 dim 1 : vector<4x256xf32>, i32 -> vector<4x256xf32>
      %c7 = arith.constant 7 : index
      %c0_36 = arith.constant 0 : index
      %c0_37 = arith.constant 0 : index
      %56 = vector.load %arg5[%c7, %c0_36, %c0_37] : memref<9x1x256xf32, #tpu.memory_space<vmem>>, vector<1x1x256xf32>
      %57 = vector.shape_cast %56 : vector<1x1x256xf32> to vector<1x256xf32>
      %58 = vector.broadcast %57 : vector<1x256xf32> to vector<4x256xf32>
      %59 = arith.mulf %55, %58 : vector<4x256xf32>
      %c28 = arith.constant 28 : index
      %c0_38 = arith.constant 0 : index
      %60 = vector.load %arg7[%c28, %c0_38] : memref<36x256xf32, #tpu.memory_space<vmem>>, vector<4x256xf32>
      tpu.vector_store %arg7[%c28, %c0_38], %59 {strides = array<i32>} : memref<36x256xf32, #tpu.memory_space<vmem>>, vector<4x256xf32>,
      %c239_i32 = arith.constant 239 : i32
      %61 = tpu.dynamic_rotate %13 by %c239_i32 dim 1 : vector<4x256xf32>, i32 -> vector<4x256xf32>
      %c8_39 = arith.constant 8 : index
      %c0_40 = arith.constant 0 : index
      %c0_41 = arith.constant 0 : index
      %62 = vector.load %arg5[%c8_39, %c0_40, %c0_41] : memref<9x1x256xf32, #tpu.memory_space<vmem>>, vector<1x1x256xf32>
      %63 = vector.shape_cast %62 : vector<1x1x256xf32> to vector<1x256xf32>
      %64 = vector.broadcast %63 : vector<1x256xf32> to vector<4x256xf32>
      %65 = arith.mulf %61, %64 : vector<4x256xf32>
      %c32 = arith.constant 32 : index
      %c0_42 = arith.constant 0 : index
      %66 = vector.load %arg7[%c32, %c0_42] : memref<36x256xf32, #tpu.memory_space<vmem>>, vector<4x256xf32>
      tpu.vector_store %arg7[%c32, %c0_42], %65 {strides = array<i32>} : memref<36x256xf32, #tpu.memory_space<vmem>>, vector<4x256xf32>,
    } else {
    }
    %c0 = arith.constant 0 : index
    %c0_1 = arith.constant 0 : index
    %3 = vector.load %arg3[%c0, %c0_1] : memref<16x36xf32, #tpu.memory_space<vmem>>, vector<16x36xf32>
    %c0_2 = arith.constant 0 : index
    %c0_3 = arith.constant 0 : index
    %4 = vector.load %arg7[%c0_2, %c0_3] : memref<36x256xf32, #tpu.memory_space<vmem>>, vector<36x256xf32>
    %cst = arith.constant dense<0.000000e+00> : vector<16x256xf32>
    %5 = tpu.matmul %3, %4, %cst {dimension_numbers = #tpu.dot_dimension_numbers<[1], [0], [0], [1], [0, 0, 1, 1], [], []>} : vector<16x36xf32>, vector<36x256xf32>, vector<16x256xf32> -> vector<16x256xf32>
    %c0_4 = arith.constant 0 : index
    %c0_5 = arith.constant 0 : index
    %6 = vector.load %arg4[%c0_4, %c0_5] : memref<16x1xf32, #tpu.memory_space<vmem>>, vector<16x1xf32>
    %7 = vector.broadcast %6 : vector<16x1xf32> to vector<16x256xf32>
    %8 = arith.addf %5, %7 : vector<16x256xf32>
    %c0_6 = arith.constant 0 : index
    %c0_7 = arith.constant 0 : index
    %c0_8 = arith.constant 0 : index
    %9 = vector.load %arg6[%c0_6, %c0_7, %c0_8] : memref<1x16x256xf32, #tpu.memory_space<vmem>>, vector<1x16x256xf32>
    %10 = vector.shape_cast %9 : vector<1x16x256xf32> to vector<16x256xf32>
    %11 = vector.shape_cast %8 : vector<16x256xf32> to vector<1x16x256xf32>
    tpu.vector_store %arg6[%c0_6, %c0_7, %c0_8], %11 {strides = array<i32>} : memref<1x16x256xf32, #tpu.memory_space<vmem>>, vector<1x16x256xf32>,
    return
  }
  func.func @transform_0(%arg0: i32, %arg1: i32) -> (i32, i32, i32) {
    %c0_i32 = arith.constant 0 : i32
    %c0_i32_0 = arith.constant 0 : i32
    %c0_i32_1 = arith.constant 0 : i32
    return %arg0, %c0_i32, %c0_i32_0 : i32, i32, i32
  }
  func.func @transform_1(%arg0: i32, %arg1: i32) -> (i32, i32) {
    %c0_i32 = arith.constant 0 : i32
    %c0_i32_0 = arith.constant 0 : i32
    return %arg1, %c0_i32 : i32, i32
  }
  func.func @transform_2(%arg0: i32, %arg1: i32) -> (i32, i32) {
    %c0_i32 = arith.constant 0 : i32
    %c0_i32_0 = arith.constant 0 : i32
    return %arg1, %c0_i32 : i32, i32
  }
  func.func @transform_3(%arg0: i32, %arg1: i32) -> (i32, i32, i32) {
    %c0_i32 = arith.constant 0 : i32
    %c0_i32_0 = arith.constant 0 : i32
    %c0_i32_1 = arith.constant 0 : i32
    %c0_i32_2 = arith.constant 0 : i32
    return %c0_i32, %c0_i32_0, %c0_i32_1 : i32, i32, i32
  }
  func.func @transform_4(%arg0: i32, %arg1: i32) -> (i32, i32, i32) {
    %c0_i32 = arith.constant 0 : i32
    %c0_i32_0 = arith.constant 0 : i32
    return %arg0, %arg1, %c0_i32 : i32, i32, i32
  }
}

</mosaic_0001>

<llo_original>
// kernel: tpu_custom_call.1
$region0: #{tpu_custom_call.1}
  #allocation0 [shape = 'u32[]', space=smem, size = 0x4, offset = 0x4, fixed_abs, tag = 'smem constant byte address 0x4 - core index']
  #allocation1 [shape = 'u32[144,128]{1,0:T(1,128)}', space=vmem, size = 0x12000, scoped, tag = 'internal scratch']
  #allocation2 [shape = 'f32[36,256]{1,0:T(8,128)}', space=vmem, size = 0xa000, scoped, tag = 'scratch operand']
  %s0 = inlined_call_operand.hbm [shape: f32[2,4,256], index: 0, kind: input, shape index: {}]
  %s1 = inlined_call_operand.hbm [shape: f32[16,36], index: 1, kind: input, shape index: {}]
  %s2 = inlined_call_operand.vmem [shape: f32[16,1], index: 2, kind: input, shape index: {}]
  %s3 = inlined_call_operand.vmem [shape: f32[9,1,256], index: 3, kind: input, shape index: {}]
  %s4 = inlined_call_operand.hbm [shape: f32[2,16,256], index: 4, kind: output, shape index: {}]
  %s5 = sld [smem:[#allocation0]]
  $region61: #{tpu_custom_call.1} parent=0
    _
  %s7 = ssub.s32 1, %s5
  %s8 = scalar_select 0, %s7, %s5
  $region1: #{tpu_custom_call.1} parent=0
    #allocation3 [shape = 'u8[8192]{0}', space=vmem, size = 0x2000, scoped, tag = 'input window, operand 0']
    #allocation4 [shape = 's32[2]{0}', space=sflag, size = 0x8, scoped, tag = 'scoped memory for tpu_custom_call.1']
    #allocation5 [shape = 's32[2]{0}', space=sflag, size = 0x8, scoped, tag = 'scoped memory for tpu_custom_call.1']
    #allocation6 [shape = 'u8[8192]{0}', space=vmem, size = 0x2000, scoped, tag = 'input window, operand 1, single buffered']
    #allocation7 [shape = 's32[1]{0}', space=sflag, size = 0x4, scoped, tag = 'scoped memory for tpu_custom_call.1']
    #allocation8 [shape = 'u8[32768]{0}', space=vmem, size = 0x8000, scoped, tag = 'output window, operand 0']
    %9 = vsyncpa [#allocation4], 0
    %s10 = scalar_lea.sflag [#allocation4], 1
    %11 = vsyncpa %s10, 0
    %12 = vsyncpa [#allocation7], 0
    %13 = vsyncpa [#allocation5], 0
    %s14 = scalar_lea.sflag [#allocation5], 1
    %15 = vsyncpa %s14, 0
    loop: start=0, step=1, limit=4
    $region2: #{tpu_custom_call.1} parent=1 // loop_pre_header
      _
    $region3: #{tpu_custom_call.1} parent=1 // loop_header
      %s17 = sphi 0, %s21
      %p18 = scmp.ge.s32.totalorder %s17, 4
      %s24 = sphi 0, %s36
      %s25 = sphi 0, %s32
      %s26 = sphi 0, %s24
      %s27 = sphi 0, %s25
      %s28 = sphi 0, %s26
      %s29 = sphi 0, %s27
      %s39 = sphi 0, %s41
      %s42 = sphi 0, %s39
      %s43 = sphi 0, %s42
      %s59 = sphi 0, %s43
      %s65 = sphi 0, %s67
      %s68 = sphi 0, %s65
      %s69 = sphi 0, %s68
      %s85 = sphi 0, %s69
      %s91 = sphi 0, %s93
      %s94 = sphi 0, %s91
      %s95 = sphi 0, %s94
      %s111 = sphi 0, %s95
      %s115 = sphi 0, %s115
      %s117 = sphi 0, %s115
      %s118 = sphi 0, %s117
      %s132 = sphi 0, %s118
      %s140 = sphi 0, %s142
      %s143 = sphi 0, %s140
      %s144 = sphi 0, %s143
      %s160 = sphi 0, %s144
    $region4: #{tpu_custom_call.1} parent=1 // loop_header_branch
      %20 = sbr.rel (%p18) target = $region8
    $region5: #{tpu_custom_call.1} parent=1 // loop_body
      %s22 = ssub.s32 %s17, 1
      %s23 = ssub.s32 %s17, 2
      %s30 = sadd.s32 1, %s25
      %p31 = scmp.ge.s32.totalorder %s30, 1
      %s32 = scalar_select %p31, 0, %s30
      %s33 = sadd.s32 1, %s24
      %s34 = scalar_select %p31, %s33, %s24
      %p35 = scmp.ge.s32.totalorder %s34, 2
      %s36 = scalar_select %p35, 0, %s34
      %s37 = ssub.s32 %s24, %s36
      %p38 = scmp.eq.s32.totalorder %s37, 0
      %s40 = sadd.s32 %s39, 1
      %s41 = scalar_select %p38, %s39, %s40
      %p44 = pneg %p38
      %p45 = scmp.eq.s32.totalorder %s17, 1
      %p46 = por %p44, %p45
      %p47 = scmp.ne.s32.totalorder %s39, %s42
      %p48 = scmp.eq.s32.totalorder %s17, 0
      %p49 = por %p47, %p48
      %p50 = scmp.ne.s32.totalorder %s39, %s42
      %p51 = scmp.eq.s32.totalorder %s22, 1
      %p52 = por %p50, %p51
      %p53 = scmp.ne.s32.totalorder %s42, %s43
      %p54 = scmp.eq.s32.totalorder %s22, 0
      %p55 = por %p53, %p54
      %p56 = scmp.ne.s32.totalorder %s42, %s43
      %p57 = scmp.eq.s32.totalorder %s23, 1
      %p58 = por %p56, %p57
      %p60 = scmp.ne.s32.totalorder %s43, %s59
      %p61 = scmp.eq.s32.totalorder %s23, 0
      %p62 = por %p60, %p61
      %s63 = ssub.s32 %s25, %s32
      %p64 = scmp.eq.s32.totalorder %s63, 0
      %s66 = sadd.s32 %s65, 1
      %s67 = scalar_select %p64, %s65, %s66
      %p70 = pneg %p64
      %p71 = scmp.eq.s32.totalorder %s17, 1
      %p72 = por %p70, %p71
      %p73 = scmp.ne.s32.totalorder %s65, %s68
      %p74 = scmp.eq.s32.totalorder %s17, 0
      %p75 = por %p73, %p74
      %p76 = scmp.ne.s32.totalorder %s65, %s68
      %p77 = scmp.eq.s32.totalorder %s22, 1
      %p78 = por %p76, %p77
      %p79 = scmp.ne.s32.totalorder %s68, %s69
      %p80 = scmp.eq.s32.totalorder %s22, 0
      %p81 = por %p79, %p80
      %p82 = scmp.ne.s32.totalorder %s68, %s69
      %p83 = scmp.eq.s32.totalorder %s23, 1
      %p84 = por %p82, %p83
      %p86 = scmp.ne.s32.totalorder %s69, %s85
      %p87 = scmp.eq.s32.totalorder %s23, 0
      %p88 = por %p86, %p87
      %s89 = ssub.s32 %s25, %s32
      %p90 = scmp.eq.s32.totalorder %s89, 0
      %s92 = sadd.s32 %s91, 1
      %s93 = scalar_select %p90, %s91, %s92
      %p96 = pneg %p90
      %p97 = scmp.eq.s32.totalorder %s17, 1
      %p98 = por %p96, %p97
      %p99 = scmp.ne.s32.totalorder %s91, %s94
      %p100 = scmp.eq.s32.totalorder %s17, 0
      %p101 = por %p99, %p100
      %p102 = scmp.ne.s32.totalorder %s91, %s94
      %p103 = scmp.eq.s32.totalorder %s22, 1
      %p104 = por %p102, %p103
      %p105 = scmp.ne.s32.totalorder %s94, %s95
      %p106 = scmp.eq.s32.totalorder %s22, 0
      %p107 = por %p105, %p106
      %p108 = scmp.ne.s32.totalorder %s94, %s95
      %p109 = scmp.eq.s32.totalorder %s23, 1
      %p110 = por %p108, %p109
      %p112 = scmp.ne.s32.totalorder %s95, %s111
      %p113 = scmp.eq.s32.totalorder %s23, 0
      %p114 = por %p112, %p113
      %s116 = sadd.s32 %s115, 1
      %p119 = scmp.eq.s32.totalorder %s17, 1
      %p120 = scmp.ne.s32.totalorder %s115, %s117
      %p121 = scmp.eq.s32.totalorder %s17, 0
      %p122 = por %p120, %p121
      %p123 = scmp.ne.s32.totalorder %s115, %s117
      %p124 = scmp.eq.s32.totalorder %s22, 1
      %p125 = por %p123, %p124
      %p126 = scmp.ne.s32.totalorder %s117, %s118
      %p127 = scmp.eq.s32.totalorder %s22, 0
      %p128 = por %p126, %p127
      %p129 = scmp.ne.s32.totalorder %s117, %s118
      %p130 = scmp.eq.s32.totalorder %s23, 1
      %p131 = por %p129, %p130
      %p133 = scmp.ne.s32.totalorder %s118, %s132
      %p134 = scmp.eq.s32.totalorder %s23, 0
      %p135 = por %p133, %p134
      %s136 = ssub.s32 %s24, %s36
      %s137 = ssub.s32 %s25, %s32
      %s138 = sor.u32 %s136, %s137
      %p139 = scmp.eq.s32.totalorder %s138, 0
      %s141 = sadd.s32 %s140, 1
      %s142 = scalar_select %p139, %s140, %s141
      %p145 = pneg %p139
      %p146 = scmp.eq.s32.totalorder %s17, 1
      %p147 = por %p145, %p146
      %p148 = scmp.ne.s32.totalorder %s140, %s143
      %p149 = scmp.eq.s32.totalorder %s17, 0
      %p150 = por %p148, %p149
      %p151 = scmp.ne.s32.totalorder %s140, %s143
      %p152 = scmp.eq.s32.totalorder %s22, 1
      %p153 = por %p151, %p152
      %p154 = scmp.ne.s32.totalorder %s143, %s144
      %p155 = scmp.eq.s32.totalorder %s22, 0
      %p156 = por %p154, %p155
      %p157 = scmp.ne.s32.totalorder %s143, %s144
      %p158 = scmp.eq.s32.totalorder %s23, 1
      %p159 = por %p157, %p158
      %p161 = scmp.ne.s32.totalorder %s144, %s160
      %p162 = scmp.eq.s32.totalorder %s23, 0
      %p163 = por %p161, %p162
      %p164 = scmp.le.s32.totalorder 1, %s17
      %p165 = scmp.lt.s32.totalorder %s17, 3
      %p166 = pnand %p164, %p165
      %p167 = pneg %p166
      // Predicated region
      $region9: #{tpu_custom_call.1} parent=5 // pred_check
        _
      $region10: #{tpu_custom_call.1} parent=5 // pred_check_branch
        %169 = sbr.rel (%p166) target = $region12
      $region11: #{tpu_custom_call.1} parent=5 // pred_region
        %s170 = ssub.s32 %s17, 1
        // Predicated region
        $region13: #{tpu_custom_call.1} parent=11 // pred_check
          %p171 = pneg %p81
        $region14: #{tpu_custom_call.1} parent=11 // pred_check_branch
          %173 = sbr.rel (%p171) target = $region16
        $region15: #{tpu_custom_call.1} parent=11 // pred_region
          %s174 = smul.u32 2, %s27
          %s176 = ssub.s32 256, 256
          %177 = vsyncadd [#allocation7], %s176
          %s178 = smul.addr %s174, 128
          %s179 = scalar_lea.hbm %s1, %s178
          %s180 = sshll.u32 [#allocation6], 4
          %s181 = int_to_ptr.vmem [resolvable:$true] %s180
          %186 = dma.hbm_to_vmem [thread:$0]  %s179, 256, %s181, [#allocation7], 128, 128, 8
        $region16: #{tpu_custom_call.1} parent=11 // pred_fallthru
          _
        // Predicated region
        $region17: #{tpu_custom_call.1} parent=11 // pred_check
          %p187 = pneg %p107
        $region18: #{tpu_custom_call.1} parent=11 // pred_check_branch
          %189 = sbr.rel (%p187) target = $region20
        $region19: #{tpu_custom_call.1} parent=11 // pred_region
          %s190 = smul.u32 2, %s27
          %p191 = scmp.lt.s32.totalorder %s190, 1
          %s192 = scalar_select %p191, %s190, 1
          %s193 = smul.addr %s192, 8
          %s194 = scalar_lea.vmem %s2, %s193
          %s195 = smul.u32 2, %s27
        $region20: #{tpu_custom_call.1} parent=11 // pred_fallthru
          _
        // Predicated region
        $region21: #{tpu_custom_call.1} parent=11 // pred_check
          %p196 = pneg %p128
        $region22: #{tpu_custom_call.1} parent=11 // pred_check_branch
          %198 = sbr.rel (%p196) target = $region24
        $region23: #{tpu_custom_call.1} parent=11 // pred_region
          _
        $region24: #{tpu_custom_call.1} parent=11 // pred_fallthru
          _
      $region12: #{tpu_custom_call.1} parent=5 // pred_fallthru
        _
      %p199 = scmp.lt.s32.totalorder %s17, 2
      // Predicated region
      $region25: #{tpu_custom_call.1} parent=5 // pred_check
        %p200 = pneg %p199
      $region26: #{tpu_custom_call.1} parent=5 // pred_check_branch
        %202 = sbr.rel (%p200) target = $region28
      $region27: #{tpu_custom_call.1} parent=5 // pred_region
        // Predicated region
        $region29: #{tpu_custom_call.1} parent=27 // pred_check
          %p203 = pneg %p49
        $region30: #{tpu_custom_call.1} parent=27 // pred_check_branch
          %205 = sbr.rel (%p203) target = $region32
        $region31: #{tpu_custom_call.1} parent=27 // pred_region
          %s206 = sand.u32 %s39, 1
          %s207 = scalar_lea.sflag [#allocation4], %s206
          %s208 = sand.u32 %s39, 1
          %s209 = smul.addr %s208, 8
          %s210 = scalar_lea.vmem [#allocation3], %s209
          %s212 = ssub.s32 128, 128
          %213 = vsyncadd %s207, %s212
          %s214 = smul.addr %s24, 2
          %s215 = smul.addr %s214, 64
          %s216 = scalar_lea.hbm %s0, %s215
          %s218 = sshll.u32 %s210, 4
          %s219 = int_to_ptr.vmem [resolvable:$true] %s218
          %221 = dma.hbm_to_vmem [thread:$0]  %s216, 128, %s219, %s207
        $region32: #{tpu_custom_call.1} parent=27 // pred_fallthru
          _
      $region28: #{tpu_custom_call.1} parent=5 // pred_fallthru
        _
      %p222 = scmp.le.s32.totalorder 1, %s17
      %p223 = scmp.lt.s32.totalorder %s17, 3
      %p224 = pnand %p222, %p223
      %p225 = pneg %p224
      // Predicated region
      $region33: #{tpu_custom_call.1} parent=5 // pred_check
        _
      $region34: #{tpu_custom_call.1} parent=5 // pred_check_branch
        %227 = sbr.rel (%p224) target = $region36
      $region35: #{tpu_custom_call.1} parent=5 // pred_region
        %s228 = ssub.s32 %s17, 1
        %s229 = sand.u32 %s42, 1
        %s230 = scalar_lea.sflag [#allocation4], %s229
        %s231 = sand.u32 %s42, 1
        %s232 = smul.addr %s231, 8
        %s233 = scalar_lea.vmem [#allocation3], %s232
        // Predicated region
        $region37: #{tpu_custom_call.1} parent=35 // pred_check
          %p234 = pneg %p55
        $region38: #{tpu_custom_call.1} parent=35 // pred_check_branch
          %236 = sbr.rel (%p234) target = $region40
        $region39: #{tpu_custom_call.1} parent=35 // pred_region
          %237 = dma.done %s230, 128
        $region40: #{tpu_custom_call.1} parent=35 // pred_fallthru
          _
        // Predicated region
        $region41: #{tpu_custom_call.1} parent=35 // pred_check
          %p238 = pneg %p81
        $region42: #{tpu_custom_call.1} parent=35 // pred_check_branch
          %240 = sbr.rel (%p238) target = $region44
        $region43: #{tpu_custom_call.1} parent=35 // pred_region
          %241 = dma.done [#allocation7], 256
        $region44: #{tpu_custom_call.1} parent=35 // pred_fallthru
          _
        %s242 = sand.u32 %s42, 1
        %s243 = scalar_lea.sflag [#allocation4], %s242
        %s244 = sand.u32 %s42, 1
        %s245 = smul.addr %s244, 8
        %s246 = scalar_lea.vmem [#allocation3], %s245
        %p247 = pneg %p55
        %p248 = pneg %p52
        %p249 = pneg %p81
        %p250 = pneg %p78
        %s251 = smul.u32 2, %s27
        %p252 = scmp.lt.s32.totalorder %s251, 1
        %s253 = scalar_select %p252, %s251, 1
        %s254 = smul.addr %s253, 8
        %s255 = scalar_lea.vmem %s2, %s254
        %p256 = pneg %p107
        %p257 = pneg %p104
        %p258 = pneg %p128
        %p259 = pneg %p125
        %p260 = pneg %p156
        %p261 = pneg %p153
        %s262 = sand.u32 %s143, 1
        %s263 = scalar_lea.sflag [#allocation5], %s262
        %s264 = sand.u32 %s143, 1
        %s265 = smul.addr %s264, 32
        %s266 = scalar_lea.vmem [#allocation8], %s265
        %s267 = smul.u32 2, %s27
        %s268 = smul.u32 2, %s27
        %p269 = scmp.lt.s32.totalorder %s268, 1
        %s270 = scalar_select %p269, %s268, 1
        %s271 = smul.addr %s270, 8
        %s272 = scalar_lea.vmem %s2, %s271
        %s273 = smul.u32 2, %s27
        %s274 = smul.u32 2, %s27
        %p275 = scmp.eq.s32.totalorder %s27, 0
        // Predicated region
        $region45: #{tpu_custom_call.1} parent=35 // pred_check
          %p276 = pneg %p275
        $region46: #{tpu_custom_call.1} parent=35 // pred_check_branch
          %278 = sbr.rel (%p276) target = $region48
        $region47: #{tpu_custom_call.1} parent=35 // pred_region
          %v279 = vld [vmem:[%s233] sm:$0xff]
          %v281 = vcombine.high %v279, %v279
          %283 = vrot.lane.b32.xlu0 %v279, 17
          %v284 = vpop.permute.xlu0 %283
          %285 = vrot.lane.b32.xlu0 %v281, 17
          %v286 = vpop.permute.xlu0 %285
          %v287 = vlaneseq
          %v288 = vand.u32 %v287, 127
          %vm289 = vcmp.lt.s32.totalorder %v288, 17
          %v290 = vsel %vm289, %v284, %v286
          %v291 = vsel %vm289, %v286, %v284
          %v292 = vld [vmem:[%s3] sm:$0x3]
          %v294 = vlaneseq
          %v295 = vshrl.u32 %v294, 7
          %v296 = vsub.s32 0, %v295
          %v297 = vrot.slane %v292, %v296
          %v298 = vlaneseq
          %v299 = vshrl.u32 %v298, 7
          %v300 = vsub.s32 1, %v299
          %v301 = vrot.slane %v292, %v300
          %v304 = vmul.f32 %v291, %v297
          %v305 = vmul.f32 %v290, %v301
          %306 = vst [vmem:[#allocation2] sm:$0xf] %v304
          %307 = vst [vmem:[#allocation2 + $0x8] sm:$0xf] %v305
          %308 = vrot.lane.b32.xlu0 %v279, 16
          %v309 = vpop.permute.xlu0 %308
          %310 = vrot.lane.b32.xlu0 %v281, 16
          %v311 = vpop.permute.xlu0 %310
          %vm312 = vcmp.lt.s32.totalorder %v288, 16
          %v313 = vsel %vm312, %v309, %v311
          %v314 = vsel %vm312, %v311, %v309
          %s315 = scalar_lea.vmem %s3, 2
          %v316 = vld [vmem:[%s315] sm:$0x3]
          %v318 = vlaneseq
          %v319 = vshrl.u32 %v318, 7
          %v320 = vsub.s32 0, %v319
          %v321 = vrot.slane %v316, %v320
          %v322 = vlaneseq
          %v323 = vshrl.u32 %v322, 7
          %v324 = vsub.s32 1, %v323
          %v325 = vrot.slane %v316, %v324
          %v328 = vmul.f32 %v314, %v321
          %v329 = vmul.f32 %v313, %v325
          %v332 = vrot.slane %v328, 4
          %v333 = vrot.slane %v329, 4
          %336 = vst [vmem:[#allocation2] sm:$0xf0] %v332
          %337 = vst [vmem:[#allocation2 + $0x8] sm:$0xf0] %v333
          %338 = vrot.lane.b32.xlu0 %v279, 15
          %v339 = vpop.permute.xlu0 %338
          %340 = vrot.lane.b32.xlu0 %v281, 15
          %v341 = vpop.permute.xlu0 %340
          %vm342 = vcmp.lt.s32.totalorder %v288, 15
          %v343 = vsel %vm342, %v339, %v341
          %v344 = vsel %vm342, %v341, %v339
          %s345 = scalar_lea.vmem %s3, 4
          %v346 = vld [vmem:[%s345] sm:$0x3]
          %v348 = vlaneseq
          %v349 = vshrl.u32 %v348, 7
          %v350 = vsub.s32 0, %v349
          %v351 = vrot.slane %v346, %v350
          %v352 = vlaneseq
          %v353 = vshrl.u32 %v352, 7
          %v354 = vsub.s32 1, %v353
          %v355 = vrot.slane %v346, %v354
          %v358 = vmul.f32 %v344, %v351
          %v359 = vmul.f32 %v343, %v355
          %360 = vst [vmem:[#allocation2 + $0x10] sm:$0xf] %v358
          %361 = vst [vmem:[#allocation2 + $0x18] sm:$0xf] %v359
          %362 = vrot.lane.b32.xlu0 %v279, 1
          %v363 = vpop.permute.xlu0 %362
          %364 = vrot.lane.b32.xlu0 %v281, 1
          %v365 = vpop.permute.xlu0 %364
          %vm366 = vcmp.lt.s32.totalorder %v288, 1
          %v367 = vsel %vm366, %v363, %v365
          %v368 = vsel %vm366, %v365, %v363
          %s369 = scalar_lea.vmem %s3, 6
          %v370 = vld [vmem:[%s369] sm:$0x3]
          %v372 = vlaneseq
          %v373 = vshrl.u32 %v372, 7
          %v374 = vsub.s32 0, %v373
          %v375 = vrot.slane %v370, %v374
          %v376 = vlaneseq
          %v377 = vshrl.u32 %v376, 7
          %v378 = vsub.s32 1, %v377
          %v379 = vrot.slane %v370, %v378
          %v382 = vmul.f32 %v368, %v375
          %v383 = vmul.f32 %v367, %v379
          %v386 = vrot.slane %v382, 4
          %v387 = vrot.slane %v383, 4
          %390 = vst [vmem:[#allocation2 + $0x10] sm:$0xf0] %v386
          %391 = vst [vmem:[#allocation2 + $0x18] sm:$0xf0] %v387
          %s392 = scalar_lea.vmem %s3, 8
          %v393 = vld [vmem:[%s392] sm:$0x3]
          %v395 = vlaneseq
          %v396 = vshrl.u32 %v395, 7
          %v397 = vsub.s32 0, %v396
          %v398 = vrot.slane %v393, %v397
          %v399 = vlaneseq
          %v400 = vshrl.u32 %v399, 7
          %v401 = vsub.s32 1, %v400
          %v402 = vrot.slane %v393, %v401
          %v403 = vcombine.low %v398, %v402
          %v405 = vmul.f32 %v279, %v403
          %v407 = vcombine.high %v405, %v405
          %409 = vst [vmem:[#allocation2 + $0x20] sm:$0xf] %v405
          %410 = vst [vmem:[#allocation2 + $0x28] sm:$0xf] %v407
          %411 = vrot.lane.b32.xlu0 %v279, 127
          %v412 = vpop.permute.xlu0 %411
          %413 = vrot.lane.b32.xlu0 %v281, 127
          %v414 = vpop.permute.xlu0 %413
          %vm415 = vcmp.lt.s32.totalorder %v288, 127
          %v416 = vsel %vm415, %v412, %v414
          %v417 = vsel %vm415, %v414, %v412
          %s418 = scalar_lea.vmem %s3, 10
          %v419 = vld [vmem:[%s418] sm:$0x3]
          %v421 = vlaneseq
          %v422 = vshrl.u32 %v421, 7
          %v423 = vsub.s32 0, %v422
          %v424 = vrot.slane %v419, %v423
          %v425 = vlaneseq
          %v426 = vshrl.u32 %v425, 7
          %v427 = vsub.s32 1, %v426
          %v428 = vrot.slane %v419, %v427
          %v431 = vmul.f32 %v416, %v424
          %v432 = vmul.f32 %v417, %v428
          %v435 = vrot.slane %v431, 4
          %v436 = vrot.slane %v432, 4
          %439 = vst [vmem:[#allocation2 + $0x20] sm:$0xf0] %v435
          %440 = vst [vmem:[#allocation2 + $0x28] sm:$0xf0] %v436
          %441 = vrot.lane.b32.xlu0 %v279, 113
          %v442 = vpop.permute.xlu0 %441
          %443 = vrot.lane.b32.xlu0 %v281, 113
          %v444 = vpop.permute.xlu0 %443
          %vm445 = vcmp.lt.s32.totalorder %v288, 113
          %v446 = vsel %vm445, %v442, %v444
          %v447 = vsel %vm445, %v444, %v442
          %s448 = scalar_lea.vmem %s3, 12
          %v449 = vld [vmem:[%s448] sm:$0x3]
          %v451 = vlaneseq
          %v452 = vshrl.u32 %v451, 7
          %v453 = vsub.s32 0, %v452
          %v454 = vrot.slane %v449, %v453
          %v455 = vlaneseq
          %v456 = vshrl.u32 %v455, 7
          %v457 = vsub.s32 1, %v456
          %v458 = vrot.slane %v449, %v457
          %v461 = vmul.f32 %v446, %v454
          %v462 = vmul.f32 %v447, %v458
          %463 = vst [vmem:[#allocation2 + $0x30] sm:$0xf] %v461
          %464 = vst [vmem:[#allocation2 + $0x38] sm:$0xf] %v462
          %465 = vrot.lane.b32.xlu0 %v279, 112
          %v466 = vpop.permute.xlu0 %465
          %467 = vrot.lane.b32.xlu0 %v281, 112
          %v468 = vpop.permute.xlu0 %467
          %vm469 = vcmp.lt.s32.totalorder %v288, 112
          %v470 = vsel %vm469, %v466, %v468
          %v471 = vsel %vm469, %v468, %v466
          %s472 = scalar_lea.vmem %s3, 14
          %v473 = vld [vmem:[%s472] sm:$0x3]
          %v475 = vlaneseq
          %v476 = vshrl.u32 %v475, 7
          %v477 = vsub.s32 0, %v476
          %v478 = vrot.slane %v473, %v477
          %v479 = vlaneseq
          %v480 = vshrl.u32 %v479, 7
          %v481 = vsub.s32 1, %v480
          %v482 = vrot.slane %v473, %v481
          %v485 = vmul.f32 %v470, %v478
          %v486 = vmul.f32 %v471, %v482
          %v489 = vrot.slane %v485, 4
          %v490 = vrot.slane %v486, 4
          %493 = vst [vmem:[#allocation2 + $0x30] sm:$0xf0] %v489
          %494 = vst [vmem:[#allocation2 + $0x38] sm:$0xf0] %v490
          %495 = vrot.lane.b32.xlu0 %v279, 111
          %v496 = vpop.permute.xlu0 %495
          %497 = vrot.lane.b32.xlu0 %v281, 111
          %v498 = vpop.permute.xlu0 %497
          %vm499 = vcmp.lt.s32.totalorder %v288, 111
          %v500 = vsel %vm499, %v496, %v498
          %v501 = vsel %vm499, %v498, %v496
          %s502 = scalar_lea.vmem %s3, 16
          %v503 = vld [vmem:[%s502] sm:$0x3]
          %v505 = vlaneseq
          %v506 = vshrl.u32 %v505, 7
          %v507 = vsub.s32 0, %v506
          %v508 = vrot.slane %v503, %v507
          %v509 = vlaneseq
          %v510 = vshrl.u32 %v509, 7
          %v511 = vsub.s32 1, %v510
          %v512 = vrot.slane %v503, %v511
          %v515 = vmul.f32 %v500, %v508
          %v516 = vmul.f32 %v501, %v512
          %517 = vst [vmem:[#allocation2 + $0x40] sm:$0xf] %v515
          %518 = vst [vmem:[#allocation2 + $0x48] sm:$0xf] %v516
        $region48: #{tpu_custom_call.1} parent=35 // pred_fallthru
          _
        %v519 = vld [vmem:[#allocation6] sm:$0xff]
        %v520 = vld [vmem:[#allocation6 + $0x8] sm:$0xff]
        %v521 = vld [vmem:[#allocation2] sm:$0xff]
        %v522 = vld [vmem:[#allocation2 + $0x8] sm:$0xff]
        %v523 = vld [vmem:[#allocation2 + $0x10] sm:$0xff]
        %v524 = vld [vmem:[#allocation2 + $0x18] sm:$0xff]
        %v525 = vld [vmem:[#allocation2 + $0x20] sm:$0xff]
        %v526 = vld [vmem:[#allocation2 + $0x28] sm:$0xff]
        %v527 = vld [vmem:[#allocation2 + $0x30] sm:$0xff]
        %v528 = vld [vmem:[#allocation2 + $0x38] sm:$0xff]
        %v529 = vld [vmem:[#allocation2 + $0x40] sm:$0xf]
        %v530 = vld [vmem:[#allocation2 + $0x48] sm:$0xf]
        %v531 = vld [vmem:[%s272] sm:$0xff]
        %v532 = vld [vmem:[%s272 + $0x8] sm:$0xff]
        %534 = vset.pattern.permute.xlu0 0
        %535 = vperm.xlu0 %534, %v531
        %v536 = vpop.permute.xlu0 %535
        %539 = vset.pattern.permute.xlu0 0
        %540 = vperm.xlu0 %539, %v532
        %v541 = vpop.permute.xlu0 %540
        %vm543 = vcmask 293888
        %v545 = vsel %vm543, %v519, 0
        %v548 = vsel %vm543, %v520, 0
        %vm550 = vcmask 1043456
        %v552 = vsel %vm550, %v529, 0
        %v555 = vsel %vm550, %v530, 0
        %557 = vmatprep.subr.mxu0 0.0
        %558 = vmatpush1.msra.mxu0 0.0
        %559 = vmatprep.subr.mxu0 0.0
        %560 = vmatpush1.msra.mxu0 0.0
        %561 = vmatprep.subr.mxu0 0.0
        %562 = vmatpush1.msra.mxu0 0.0
        %563 = vmatprep.subr.mxu0 0.0
        %564 = vmatpush1.msra.mxu0 0.0
        %565 = vmatprep.subr.mxu0 0.0
        %566 = vmatpush1.msra.mxu0 0.0
        %567 = vmatprep.subr.mxu0 0.0
        %568 = vmatpush1.msra.mxu0 0.0
        %569 = vmatprep.subr.mxu0 0.0
        %570 = vmatpush1.msra.mxu0 0.0
        %571 = vmatprep.subr.mxu0 0.0
        %572 = vmatpush1.msra.mxu0 0.0
        %573 = vmatprep.subr.mxu0 0.0
        %574 = vmatpush1.msra.mxu0 0.0
        %575 = vmatprep.subr.mxu0 0.0
        %576 = vmatpush1.msra.mxu0 0.0
        %577 = vmatprep.subr.mxu0 0.0
        %578 = vmatpush1.msra.mxu0 0.0
        %579 = vmatprep.subr.mxu0 %v555
        %580 = vmatpush1.msra.mxu0 %v552
        %581 = vmatprep.subr.mxu0 %v528
        %582 = vmatpush1.msra.mxu0 %v527
        %583 = vmatprep.subr.mxu0 %v526
        %584 = vmatpush1.msra.mxu0 %v525
        %585 = vmatprep.subr.mxu0 %v524
        %586 = vmatpush1.msra.mxu0 %v523
        %587 = vmatprep.subr.mxu0 %v522
        %588 = vmatpush1.msra.mxu0 %v521
        %589 = vmatprep.subr.mxu0 0.0
        %590 = vmatpush2.msra.mxu0 0.0
        %591 = vmatprep.subr.mxu0 0.0
        %592 = vmatpush2.msra.mxu0 0.0
        %593 = vmatprep.subr.mxu0 0.0
        %594 = vmatpush2.msra.mxu0 0.0
        %595 = vmatprep.subr.mxu0 0.0
        %596 = vmatpush2.msra.mxu0 0.0
        %597 = vmatprep.subr.mxu0 0.0
        %598 = vmatpush2.msra.mxu0 0.0
        %599 = vmatprep.subr.mxu0 0.0
        %600 = vmatpush2.msra.mxu0 0.0
        %601 = vmatprep.subr.mxu0 0.0
        %602 = vmatpush2.msra.mxu0 0.0
        %603 = vmatprep.subr.mxu0 0.0
        %604 = vmatpush2.msra.mxu0 0.0
        %605 = vmatprep.subr.mxu0 0.0
        %606 = vmatpush2.msra.mxu0 0.0
        %607 = vmatprep.subr.mxu0 0.0
        %608 = vmatpush2.msra.mxu0 0.0
        %609 = vmatprep.subr.mxu0 0.0
        %610 = vmatpush2.msra.mxu0 0.0
        %611 = vmatprep.subr.mxu0 0.0
        %612 = vmatpush2.msra.mxu0 0.0
        %613 = vmatprep.subr.mxu0 0.0
        %614 = vmatpush2.msra.mxu0 0.0
        %615 = vmatprep.subr.mxu0 0.0
        %616 = vmatpush2.msra.mxu0 0.0
        %617 = vmatprep.subr.mxu0 0.0
        %618 = vmatpush2.msra.mxu0 0.0
        %619 = vmatprep.subr.mxu0 0.0
        %620 = vmatpush2.msra.mxu0 0.0
        %621 = vmatprep.mubr.f32.mxu0 0.0
        %622 = vmatmul.mubr.f32.gmra.mxu0 %v545
        %v623 = vpop.f32.mrf.mxu0
        %v624 = vadd.f32 %v536, %v623
        %v625 = vpop.f32.mrf.mxu0
        %v626 = vadd.f32 %v536, %v625
        %627 = vmatprep.mubr.f32.mxu0 0.0
        %628 = vmatmul.mubr.f32.gmra.mxu0 %v548
        %v629 = vpop.f32.mrf.mxu0
        %v630 = vadd.f32 %v541, %v629
        %v631 = vpop.f32.mrf.mxu0
        %v632 = vadd.f32 %v541, %v631
        %633 = vdwg.mxu0
        %634 = vst [vmem:[%s266] sm:$0xff] %v624
        %635 = vst [vmem:[%s266 + $0x8] sm:$0xff] %v626
        %636 = vst [vmem:[%s266 + $0x10] sm:$0xff] %v630
        %637 = vst [vmem:[%s266 + $0x18] sm:$0xff] %v632
        %s638 = sand.u32 %s143, 1
        %s639 = scalar_lea.sflag [#allocation5], %s638
        %s640 = sand.u32 %s143, 1
        %s641 = smul.addr %s640, 32
        %s642 = scalar_lea.vmem [#allocation8], %s641
        // Predicated region
        $region49: #{tpu_custom_call.1} parent=35 // pred_check
          %p643 = pneg %p153
        $region50: #{tpu_custom_call.1} parent=35 // pred_check_branch
          %645 = sbr.rel (%p643) target = $region52
        $region51: #{tpu_custom_call.1} parent=35 // pred_region
          %s646 = smul.u32 2, %s27
          %s648 = ssub.s32 512, 512
          %649 = vsyncadd %s639, %s648
          %s650 = smul.addr %s646, 2
          %s651 = smul.addr %s26, 4
          %s652 = sadd.s32 %s650, %s651
          %s653 = smul.addr %s652, 128
          %s654 = scalar_lea.hbm %s4, %s653
          %s655 = sshll.u32 %s642, 4
          %s656 = int_to_ptr.vmem [resolvable:$true] %s655
          %661 = dma.vmem_to_hbm [thread:$0]  %s656, 512, %s654, %s639, 256, 256, 16
        $region52: #{tpu_custom_call.1} parent=35 // pred_fallthru
          _
      $region36: #{tpu_custom_call.1} parent=5 // pred_fallthru
        _
      %p662 = scmp.le.s32.totalorder 2, %s17
      // Predicated region
      $region53: #{tpu_custom_call.1} parent=5 // pred_check
        %p663 = pneg %p662
      $region54: #{tpu_custom_call.1} parent=5 // pred_check_branch
        %665 = sbr.rel (%p663) target = $region56
      $region55: #{tpu_custom_call.1} parent=5 // pred_region
        %s666 = ssub.s32 %s17, 2
        // Predicated region
        $region57: #{tpu_custom_call.1} parent=55 // pred_check
          %p667 = pneg %p159
        $region58: #{tpu_custom_call.1} parent=55 // pred_check_branch
          %669 = sbr.rel (%p667) target = $region60
        $region59: #{tpu_custom_call.1} parent=55 // pred_region
          %s670 = sand.u32 %s144, 1
          %s671 = scalar_lea.sflag [#allocation5], %s670
          %s672 = sand.u32 %s144, 1
          %s673 = smul.addr %s672, 32
          %s674 = scalar_lea.vmem [#allocation8], %s673
          %675 = dma.done %s671, 512
        $region60: #{tpu_custom_call.1} parent=55 // pred_fallthru
          _
      $region56: #{tpu_custom_call.1} parent=5 // pred_fallthru
        _
    $region6: #{tpu_custom_call.1} parent=1 // loop_footer
      %s21 = sadd.s32 1, %s17
    $region7: #{tpu_custom_call.1} parent=1 // loop_footer_branch
      %16 = sbr.rel target = $region3
    $region8: #{tpu_custom_call.1} parent=1 // loop_exit
      _
    %676 = vsyncpa [#allocation4], 1
    %s677 = scalar_lea.sflag [#allocation4], 1
    %678 = vsyncpa %s677, 1
    %679 = vsyncpa [#allocation7], 1
    %680 = vsyncpa [#allocation5], 1
    %s681 = scalar_lea.sflag [#allocation5], 1
    %682 = vsyncpa %s681, 1

</llo_original>
